<compile_context>
chip_gen: v6e
topology: v6e:2x2x1
jax: 0.10.0
libtpu: 0.0.40
codegen_flags: <defaults>
</compile_context>

<pallas_src>
import functools

import jax
import jax.numpy as jnp
from jax import lax
from jax.experimental import pallas as pl
from jax.experimental.pallas import tpu as pltpu


def _cx_kernel(if_ref, tf_ref, out_ref, *, sigma, b, epsilon):
    # Blocks are (1, C, N): channels on sublanes, spatial positions on lanes.
    # `b` cancels algebraically in max_j of the normalized weights; kept only
    # for signature parity with the PyTorch module.
    del b

    x = if_ref[0].astype(jnp.float32)        # (C, N) image features
    t = tf_ref[0].astype(jnp.float32)        # (C, N) target features

    # Center both feature sets by the target mean over spatial positions
    # (cross-lane reduce on a small (C, N) block) -> (C, 1).
    t_mean = jnp.mean(t, axis=1, keepdims=True)
    xc = x - t_mean
    tc = t - t_mean

    # L2-normalize along the channel axis (cheap sublane reduce).  No epsilon,
    # matching the PyTorch code (NaN if a centered column is exactly zero).
    xn = xc * lax.rsqrt(jnp.sum(xc * xc, axis=0, keepdims=True))
    tn = tc * lax.rsqrt(jnp.sum(tc * tc, axis=0, keepdims=True))

    # Cosine "distance": sim[i, j] = 1 - <xn[:, i], tn[:, j]>.  Contract the
    # channel axis of both (C, N) operands directly; no explicit transpose.
    cos = lax.dot_general(
        xn, tn,
        dimension_numbers=(((0,), (0,)), ((), ())),
        preferred_element_type=jnp.float32)
    sim = 1.0 - cos                                        # (N, N)

    # Row-wise min over j (cross-lane reduce).
    d_min = jnp.min(sim, axis=1, keepdims=True)            # (N, 1)

    # Fold both divides into one per-row scale (length-N EUP reciprocal),
    # then a single N^2 multiply feeding the exp.  Exponent <= 0 -> stable.
    neg_scale = -pl.reciprocal(sigma * (d_min + epsilon), approx=True)  # (N,1)
    w = jnp.exp(sim * neg_scale)                           # (N, N) exp on EUP
    denom = jnp.sum(w, axis=1, keepdims=True)              # (N, 1)
    m = jnp.exp(d_min * neg_scale) * pl.reciprocal(denom, approx=True)  # (N,1)

    cs = jnp.mean(m)                                       # per-batch CS
    out_ref[...] = jnp.broadcast_to(cs, out_ref.shape)


def contextual_loss(image_features, target_features,
                    sigma=0.1, b=1.0, epsilon=1e-5):
    """Pallas-backed ContextualLoss (similarity='cos'). Inputs are NCHW."""
    B, C, H, W = image_features.shape
    assert target_features.shape == (B, C, H, W)
    N = H * W

    # NCHW -> (B, C, N): a free reshape (no HBM transpose).  Keep the input
    # dtype through the DMA (bf16 stays bf16); the kernel upcasts in VMEM.
    if_vec = image_features.reshape(B, C, N)
    tf_vec = target_features.reshape(B, C, N)

    # TODO(synk): for N beyond ~1-1.5k the (N, N) similarity should be tiled
    # over column blocks (two-pass: row-min then exp-sum) instead of being
    # held whole in VMEM; the monolithic per-batch path covers typical sizes.

    kernel = functools.partial(_cx_kernel, sigma=float(sigma), b=float(b),
                               epsilon=float(epsilon))

    itemsize = jnp.dtype(if_vec.dtype).itemsize
    cost = pl.CostEstimate(
        flops=2 * B * N * N * C,
        transcendentals=B * N * N,
        bytes_accessed=2 * B * C * N * itemsize + B * 8 * 128 * 4)

    # Rough per-step VMEM need: sim + exp-weights (+ slack) plus the
    # double-buffered (C, N) inputs; clamp with headroom under v7x's 64 MiB.
    vmem_need = 4 * N * N * 4 + 8 * C * N * itemsize + (2 << 20)
    vmem_limit = int(min(max(vmem_need, 32 << 20), 56 << 20))

    # Per-batch scalar CS broadcast over a lane-dense (8, 128) tile so the
    # output store is an unmasked full-vreg vst; element [b, 0, 0] is read
    # afterwards.
    cs_tiles = pl.pallas_call(
        kernel,
        out_shape=jax.ShapeDtypeStruct((B, 8, 128), jnp.float32),
        grid=(B,),
        in_specs=[
            pl.BlockSpec((1, C, N), lambda i: (i, 0, 0)),
            pl.BlockSpec((1, C, N), lambda i: (i, 0, 0)),
        ],
        out_specs=pl.BlockSpec((1, 8, 128), lambda i: (i, 0, 0)),
        compiler_params=pltpu.CompilerParams(
            dimension_semantics=("parallel",),
            vmem_limit_bytes=vmem_limit),
        cost_estimate=cost,
    )(if_vec, tf_vec)

    cs = cs_tiles[:, 0, 0]                    # (B,)
    return jnp.mean(-jnp.log(cs))             # scalar loss


def _reference_loss(image_features, target_features,
                    sigma=0.1, b=1.0, epsilon=1e-5):
    """Pure-JAX reference mirroring the PyTorch module, for validation."""
    B, C, H, W = image_features.shape
    N = H * W
    ifv = jnp.transpose(image_features.reshape(B, C, N), (0, 2, 1))
    tfv = jnp.transpose(target_features.reshape(B, C, N), (0, 2, 1))
    t_mean = jnp.mean(tfv, axis=1, keepdims=True)
    ic = ifv - t_mean
    tc = tfv - t_mean
    icn = ic / jnp.sqrt(jnp.sum(ic * ic, axis=2, keepdims=True))
    tcn = tc / jnp.sqrt(jnp.sum(tc * tc, axis=2, keepdims=True))
    sim = 1.0 - jnp.einsum('bnc,bmc->bnm', icn, tcn)
    rel = sim / (jnp.min(sim, axis=2, keepdims=True) + epsilon)
    w = jnp.exp((b - rel) / sigma)
    wn = w / jnp.sum(w, axis=2, keepdims=True)
    m = jnp.max(wn, axis=2)
    cs = jnp.mean(m, axis=1)
    return jnp.mean(-jnp.log(cs))


if __name__ == "__main__":
    # ContextualLoss has no learnable parameters; only hyperparameters
    # sigma=0.1, b=1.0, epsilon=1e-5, similarity='cos' (defaults used).
    key = jax.random.PRNGKey(0)
    k1, k2 = jax.random.split(key)
    B, C, H, W = 2, 4, 16, 16
    image_features = jax.random.normal(k1, (B, C, H, W), dtype=jnp.float32)
    target_features = jax.random.normal(k2, (B, C, H, W), dtype=jnp.float32)

    loss = jax.block_until_ready(contextual_loss(image_features, target_features))
    ref = jax.block_until_ready(_reference_loss(image_features, target_features))

    # Approx EUP reciprocals + algebraic reassociation of the softmax imply a
    # slightly looser-than-bit-exact tolerance; still a tight functional check.
    assert jnp.allclose(loss, ref, rtol=1e-3, atol=1e-5), (loss, ref)

    print("KERNEL_OK")
</pallas_src>

<mosaic_0001>
module attributes {stable_mosaic.version = 11 : i64} {
  func.func @_cx_kernel(%arg0: i32, %arg1: memref<1x4x256xf32, #tpu.memory_space<vmem>>, %arg2: memref<1x4x256xf32, #tpu.memory_space<vmem>>, %arg3: memref<1x8x128xf32, #tpu.memory_space<vmem>>) attributes {dimension_semantics = [#tpu.dimension_semantics<parallel>], iteration_bounds = array<i64: 2>, scalar_prefetch = 0 : i64, scratch_operands = 0 : i64, tpu.core_type = #tpu.core_type<tc>, window_params = [{transform_indices = @transform_0, window_bounds = array<i64: 1, 4, 256>}, {transform_indices = @transform_1, window_bounds = array<i64: 1, 4, 256>}, {transform_indices = @transform_2, window_bounds = array<i64: 1, 8, 128>}]} {
    %c0 = arith.constant 0 : index
    %c0_0 = arith.constant 0 : index
    %c0_1 = arith.constant 0 : index
    %0 = vector.load %arg1[%c0, %c0_0, %c0_1] : memref<1x4x256xf32, #tpu.memory_space<vmem>>, vector<1x4x256xf32>
    %1 = vector.shape_cast %0 : vector<1x4x256xf32> to vector<4x256xf32>
    %c0_2 = arith.constant 0 : index
    %c0_3 = arith.constant 0 : index
    %c0_4 = arith.constant 0 : index
    %2 = vector.load %arg2[%c0_2, %c0_3, %c0_4] : memref<1x4x256xf32, #tpu.memory_space<vmem>>, vector<1x4x256xf32>
    %3 = vector.shape_cast %2 : vector<1x4x256xf32> to vector<4x256xf32>
    %cst = arith.constant dense<0.000000e+00> : vector<4xf32>
    %4 = vector.multi_reduction <add>, %3, %cst [1] : vector<4x256xf32> to vector<4xf32>
    %5 = vector.shape_cast %4 : vector<4xf32> to vector<4x1xf32>
    %cst_5 = arith.constant 2.560000e+02 : f32
    %6 = vector.broadcast %cst_5 : f32 to vector<4x1xf32>
    %7 = arith.divf %5, %6 : vector<4x1xf32>
    %8 = vector.broadcast %7 : vector<4x1xf32> to vector<4x256xf32>
    %9 = arith.subf %1, %8 : vector<4x256xf32>
    %10 = vector.broadcast %7 : vector<4x1xf32> to vector<4x256xf32>
    %11 = arith.subf %3, %10 : vector<4x256xf32>
    %12 = arith.mulf %9, %9 : vector<4x256xf32>
    %cst_6 = arith.constant dense<0.000000e+00> : vector<256xf32>
    %13 = vector.multi_reduction <add>, %12, %cst_6 [0] : vector<4x256xf32> to vector<256xf32>
    %14 = vector.shape_cast %13 : vector<256xf32> to vector<1x256xf32>
    %15 = math.rsqrt %14 : vector<1x256xf32>
    %16 = vector.broadcast %15 : vector<1x256xf32> to vector<4x256xf32>
    %17 = arith.mulf %9, %16 : vector<4x256xf32>
    %18 = arith.mulf %11, %11 : vector<4x256xf32>
    %cst_7 = arith.constant dense<0.000000e+00> : vector<256xf32>
    %19 = vector.multi_reduction <add>, %18, %cst_7 [0] : vector<4x256xf32> to vector<256xf32>
    %20 = vector.shape_cast %19 : vector<256xf32> to vector<1x256xf32>
    %21 = math.rsqrt %20 : vector<1x256xf32>
    %22 = vector.broadcast %21 : vector<1x256xf32> to vector<4x256xf32>
    %23 = arith.mulf %11, %22 : vector<4x256xf32>
    %cst_8 = arith.constant dense<0.000000e+00> : vector<256x256xf32>
    %24 = tpu.matmul %17, %23, %cst_8 {dimension_numbers = #tpu.dot_dimension_numbers<[0], [0], [1], [1], [0, 1, 1, 1], [], []>} : vector<4x256xf32>, vector<4x256xf32>, vector<256x256xf32> -> vector<256x256xf32>
    %cst_9 = arith.constant 1.000000e+00 : f32
    %25 = vector.broadcast %cst_9 : f32 to vector<256x256xf32>
    %26 = arith.subf %25, %24 : vector<256x256xf32>
    %cst_10 = arith.constant dense<0x7F800000> : vector<256xf32>
    %27 = vector.multi_reduction <minimumf>, %26, %cst_10 [1] : vector<256x256xf32> to vector<256xf32>
    %28 = vector.shape_cast %27 : vector<256xf32> to vector<256x1xf32>
    %cst_11 = arith.constant 9.99999974E-6 : f32
    %29 = vector.broadcast %cst_11 : f32 to vector<256x1xf32>
    %30 = arith.addf %28, %29 : vector<256x1xf32>
    %cst_12 = arith.constant 1.000000e-01 : f32
    %31 = vector.broadcast %cst_12 : f32 to vector<256x1xf32>
    %32 = arith.mulf %31, %30 : vector<256x1xf32>
    %33 = tpu.reciprocal %32 {approx = true} : vector<256x1xf32> -> vector<256x1xf32>
    %cst_13 = arith.constant 0.000000e+00 : f32
    %34 = vector.broadcast %cst_13 : f32 to vector<256x1xf32>
    %35 = arith.subf %34, %33 : vector<256x1xf32>
    %36 = vector.broadcast %35 : vector<256x1xf32> to vector<256x256xf32>
    %37 = arith.mulf %26, %36 : vector<256x256xf32>
    %38 = math.exp %37 : vector<256x256xf32>
    %cst_14 = arith.constant dense<0.000000e+00> : vector<256xf32>
    %39 = vector.multi_reduction <add>, %38, %cst_14 [1] : vector<256x256xf32> to vector<256xf32>
    %40 = vector.shape_cast %39 : vector<256xf32> to vector<256x1xf32>
    %41 = arith.mulf %28, %35 : vector<256x1xf32>
    %42 = math.exp %41 : vector<256x1xf32>
    %43 = tpu.reciprocal %40 {approx = true} : vector<256x1xf32> -> vector<256x1xf32>
    %44 = arith.mulf %42, %43 : vector<256x1xf32>
    %45 = vector.shape_cast %44 : vector<256x1xf32> to vector<1x256x1xf32>
    %cst_15 = arith.constant dense<0.000000e+00> : vector<1xf32>
    %46 = vector.multi_reduction <add>, %45, %cst_15 [1, 2] : vector<1x256x1xf32> to vector<1xf32>
    %47 = vector.shape_cast %46 : vector<1xf32> to vector<1x1x1xf32>
    %48 = vector.extract %47[0, 0, 0] : f32 from vector<1x1x1xf32>
    %cst_16 = arith.constant 2.560000e+02 : f32
    %49 = arith.divf %48, %cst_16 : f32
    %50 = vector.broadcast %49 : f32 to vector<1x8x128xf32>
    %c0_17 = arith.constant 0 : index
    %c0_18 = arith.constant 0 : index
    %c0_19 = arith.constant 0 : index
    %51 = vector.load %arg3[%c0_17, %c0_18, %c0_19] : memref<1x8x128xf32, #tpu.memory_space<vmem>>, vector<1x8x128xf32>
    tpu.vector_store %arg3[%c0_17, %c0_18, %c0_19], %50 {strides = array<i32>} : memref<1x8x128xf32, #tpu.memory_space<vmem>>, vector<1x8x128xf32>,
    return
  }
  func.func @transform_0(%arg0: i32) -> (i32, i32, i32) {
    %c0_i32 = arith.constant 0 : i32
    %c0_i32_0 = arith.constant 0 : i32
    %c0_i32_1 = arith.constant 0 : i32
    return %arg0, %c0_i32, %c0_i32_0 : i32, i32, i32
  }
  func.func @transform_1(%arg0: i32) -> (i32, i32, i32) {
    %c0_i32 = arith.constant 0 : i32
    %c0_i32_0 = arith.constant 0 : i32
    %c0_i32_1 = arith.constant 0 : i32
    return %arg0, %c0_i32, %c0_i32_0 : i32, i32, i32
  }
  func.func @transform_2(%arg0: i32) -> (i32, i32, i32) {
    %c0_i32 = arith.constant 0 : i32
    %c0_i32_0 = arith.constant 0 : i32
    %c0_i32_1 = arith.constant 0 : i32
    return %arg0, %c0_i32, %c0_i32_0 : i32, i32, i32
  }
}

</mosaic_0001>

<llo_original>
// kernel: tpu_custom_call.1
$region0: #{tpu_custom_call.1}
  #allocation0 [shape = 'u32[]', space=smem, size = 0x4, offset = 0x4, fixed_abs, tag = 'smem constant byte address 0x4 - core index']
  #allocation1 [shape = 'u32[144,128]{1,0:T(1,128)}', space=vmem, size = 0x12000, scoped, tag = 'internal scratch']
  %s0 = inlined_call_operand.hbm [shape: f32[2,4,256], index: 0, kind: input, shape index: {}]
  %s1 = inlined_call_operand.hbm [shape: f32[2,4,256], index: 1, kind: input, shape index: {}]
  %s2 = inlined_call_operand.hbm [shape: f32[2,8,128], index: 2, kind: output, shape index: {}]
  %s3 = sld [smem:[#allocation0]]
  $region49: #{tpu_custom_call.1} parent=0
    _
  %s5 = ssub.s32 1, %s3
  %s6 = scalar_select 0, %s5, %s3
  $region1: #{tpu_custom_call.1} parent=0
    #allocation2 [shape = 'u8[8192]{0}', space=vmem, size = 0x2000, scoped, tag = 'input window, operand 0']
    #allocation3 [shape = 's32[2]{0}', space=sflag, size = 0x8, scoped, tag = 'scoped memory for tpu_custom_call.1']
    #allocation4 [shape = 's32[2]{0}', space=sflag, size = 0x8, scoped, tag = 'scoped memory for tpu_custom_call.1']
    #allocation5 [shape = 'u8[8192]{0}', space=vmem, size = 0x2000, scoped, tag = 'input window, operand 1']
    #allocation6 [shape = 's32[2]{0}', space=sflag, size = 0x8, scoped, tag = 'scoped memory for tpu_custom_call.1']
    #allocation7 [shape = 'u8[8192]{0}', space=vmem, size = 0x2000, scoped, tag = 'output window, operand 0']
    %7 = vsyncpa [#allocation3], 0
    %s8 = scalar_lea.sflag [#allocation3], 1
    %9 = vsyncpa %s8, 0
    %10 = vsyncpa [#allocation6], 0
    %s11 = scalar_lea.sflag [#allocation6], 1
    %12 = vsyncpa %s11, 0
    %13 = vsyncpa [#allocation4], 0
    %s14 = scalar_lea.sflag [#allocation4], 1
    %15 = vsyncpa %s14, 0
    loop: start=0, step=1, limit=4
    $region2: #{tpu_custom_call.1} parent=1 // loop_pre_header
      _
    $region3: #{tpu_custom_call.1} parent=1 // loop_header
      %s17 = sphi 0, %s21
      %p18 = scmp.ge.s32.totalorder %s17, 4
      %s27 = sphi 0, %s29
      %s30 = sphi 0, %s27
      %s31 = sphi 0, %s30
      %s47 = sphi 0, %s31
      %s53 = sphi 0, %s55
      %s56 = sphi 0, %s53
      %s57 = sphi 0, %s56
      %s73 = sphi 0, %s57
      %s79 = sphi 0, %s81
      %s82 = sphi 0, %s79
      %s83 = sphi 0, %s82
      %s99 = sphi 0, %s83
    $region4: #{tpu_custom_call.1} parent=1 // loop_header_branch
      %20 = sbr.rel (%p18) target = $region8
    $region5: #{tpu_custom_call.1} parent=1 // loop_body
      %s22 = ssub.s32 %s17, 1
      %s23 = ssub.s32 %s17, 2
      %s24 = sadd.s32 %s17, 1
      %s25 = ssub.s32 %s17, %s24
      %p26 = scmp.eq.s32.totalorder %s25, 0
      %s28 = sadd.s32 %s27, 1
      %s29 = scalar_select %p26, %s27, %s28
      %p32 = pneg %p26
      %p33 = scmp.eq.s32.totalorder %s17, 1
      %p34 = por %p32, %p33
      %p35 = scmp.ne.s32.totalorder %s27, %s30
      %p36 = scmp.eq.s32.totalorder %s17, 0
      %p37 = por %p35, %p36
      %p38 = scmp.ne.s32.totalorder %s27, %s30
      %p39 = scmp.eq.s32.totalorder %s22, 1
      %p40 = por %p38, %p39
      %p41 = scmp.ne.s32.totalorder %s30, %s31
      %p42 = scmp.eq.s32.totalorder %s22, 0
      %p43 = por %p41, %p42
      %p44 = scmp.ne.s32.totalorder %s30, %s31
      %p45 = scmp.eq.s32.totalorder %s23, 1
      %p46 = por %p44, %p45
      %p48 = scmp.ne.s32.totalorder %s31, %s47
      %p49 = scmp.eq.s32.totalorder %s23, 0
      %p50 = por %p48, %p49
      %s51 = ssub.s32 %s17, %s24
      %p52 = scmp.eq.s32.totalorder %s51, 0
      %s54 = sadd.s32 %s53, 1
      %s55 = scalar_select %p52, %s53, %s54
      %p58 = pneg %p52
      %p59 = scmp.eq.s32.totalorder %s17, 1
      %p60 = por %p58, %p59
      %p61 = scmp.ne.s32.totalorder %s53, %s56
      %p62 = scmp.eq.s32.totalorder %s17, 0
      %p63 = por %p61, %p62
      %p64 = scmp.ne.s32.totalorder %s53, %s56
      %p65 = scmp.eq.s32.totalorder %s22, 1
      %p66 = por %p64, %p65
      %p67 = scmp.ne.s32.totalorder %s56, %s57
      %p68 = scmp.eq.s32.totalorder %s22, 0
      %p69 = por %p67, %p68
      %p70 = scmp.ne.s32.totalorder %s56, %s57
      %p71 = scmp.eq.s32.totalorder %s23, 1
      %p72 = por %p70, %p71
      %p74 = scmp.ne.s32.totalorder %s57, %s73
      %p75 = scmp.eq.s32.totalorder %s23, 0
      %p76 = por %p74, %p75
      %s77 = ssub.s32 %s17, %s24
      %p78 = scmp.eq.s32.totalorder %s77, 0
      %s80 = sadd.s32 %s79, 1
      %s81 = scalar_select %p78, %s79, %s80
      %p84 = pneg %p78
      %p85 = scmp.eq.s32.totalorder %s17, 1
      %p86 = por %p84, %p85
      %p87 = scmp.ne.s32.totalorder %s79, %s82
      %p88 = scmp.eq.s32.totalorder %s17, 0
      %p89 = por %p87, %p88
      %p90 = scmp.ne.s32.totalorder %s79, %s82
      %p91 = scmp.eq.s32.totalorder %s22, 1
      %p92 = por %p90, %p91
      %p93 = scmp.ne.s32.totalorder %s82, %s83
      %p94 = scmp.eq.s32.totalorder %s22, 0
      %p95 = por %p93, %p94
      %p96 = scmp.ne.s32.totalorder %s82, %s83
      %p97 = scmp.eq.s32.totalorder %s23, 1
      %p98 = por %p96, %p97
      %p100 = scmp.ne.s32.totalorder %s83, %s99
      %p101 = scmp.eq.s32.totalorder %s23, 0
      %p102 = por %p100, %p101
      %p103 = scmp.le.s32.totalorder 1, %s17
      %p104 = scmp.lt.s32.totalorder %s17, 3
      %p105 = pnand %p103, %p104
      %p106 = pneg %p105
      // Predicated region
      $region9: #{tpu_custom_call.1} parent=5 // pred_check
        _
      $region10: #{tpu_custom_call.1} parent=5 // pred_check_branch
        %108 = sbr.rel (%p105) target = $region12
      $region11: #{tpu_custom_call.1} parent=5 // pred_region
        %s109 = ssub.s32 %s17, 1
      $region12: #{tpu_custom_call.1} parent=5 // pred_fallthru
        _
      %p110 = scmp.lt.s32.totalorder %s17, 2
      // Predicated region
      $region13: #{tpu_custom_call.1} parent=5 // pred_check
        %p111 = pneg %p110
      $region14: #{tpu_custom_call.1} parent=5 // pred_check_branch
        %113 = sbr.rel (%p111) target = $region16
      $region15: #{tpu_custom_call.1} parent=5 // pred_region
        // Predicated region
        $region17: #{tpu_custom_call.1} parent=15 // pred_check
          %p114 = pneg %p37
        $region18: #{tpu_custom_call.1} parent=15 // pred_check_branch
          %116 = sbr.rel (%p114) target = $region20
        $region19: #{tpu_custom_call.1} parent=15 // pred_region
          %s117 = sand.u32 %s27, 1
          %s118 = scalar_lea.sflag [#allocation3], %s117
          %s119 = sand.u32 %s27, 1
          %s120 = smul.addr %s119, 8
          %s121 = scalar_lea.vmem [#allocation2], %s120
          %s123 = ssub.s32 128, 128
          %124 = vsyncadd %s118, %s123
          %s125 = smul.addr %s17, 2
          %s126 = smul.addr %s125, 64
          %s127 = scalar_lea.hbm %s0, %s126
          %s129 = sshll.u32 %s121, 4
          %s130 = int_to_ptr.vmem [resolvable:$true] %s129
          %132 = dma.hbm_to_vmem [thread:$0]  %s127, 128, %s130, %s118
        $region20: #{tpu_custom_call.1} parent=15 // pred_fallthru
          _
        // Predicated region
        $region21: #{tpu_custom_call.1} parent=15 // pred_check
          %p133 = pneg %p63
        $region22: #{tpu_custom_call.1} parent=15 // pred_check_branch
          %135 = sbr.rel (%p133) target = $region24
        $region23: #{tpu_custom_call.1} parent=15 // pred_region
          %s136 = sand.u32 %s53, 1
          %s137 = scalar_lea.sflag [#allocation6], %s136
          %s138 = sand.u32 %s53, 1
          %s139 = smul.addr %s138, 8
          %s140 = scalar_lea.vmem [#allocation5], %s139
          %s142 = ssub.s32 128, 128
          %143 = vsyncadd %s137, %s142
          %s144 = smul.addr %s17, 2
          %s145 = smul.addr %s144, 64
          %s146 = scalar_lea.hbm %s1, %s145
          %s148 = sshll.u32 %s140, 4
          %s149 = int_to_ptr.vmem [resolvable:$true] %s148
          %151 = dma.hbm_to_vmem [thread:$0]  %s146, 128, %s149, %s137
        $region24: #{tpu_custom_call.1} parent=15 // pred_fallthru
          _
      $region16: #{tpu_custom_call.1} parent=5 // pred_fallthru
        _
      %p152 = scmp.le.s32.totalorder 1, %s17
      %p153 = scmp.lt.s32.totalorder %s17, 3
      %p154 = pnand %p152, %p153
      %p155 = pneg %p154
      // Predicated region
      $region25: #{tpu_custom_call.1} parent=5 // pred_check
        _
      $region26: #{tpu_custom_call.1} parent=5 // pred_check_branch
        %157 = sbr.rel (%p154) target = $region28
      $region27: #{tpu_custom_call.1} parent=5 // pred_region
        %s158 = ssub.s32 %s17, 1
        %s159 = sand.u32 %s30, 1
        %s160 = scalar_lea.sflag [#allocation3], %s159
        %s161 = sand.u32 %s30, 1
        %s162 = smul.addr %s161, 8
        %s163 = scalar_lea.vmem [#allocation2], %s162
        // Predicated region
        $region29: #{tpu_custom_call.1} parent=27 // pred_check
          %p164 = pneg %p43
        $region30: #{tpu_custom_call.1} parent=27 // pred_check_branch
          %166 = sbr.rel (%p164) target = $region32
        $region31: #{tpu_custom_call.1} parent=27 // pred_region
          %167 = dma.done %s160, 128
        $region32: #{tpu_custom_call.1} parent=27 // pred_fallthru
          _
        %s168 = sand.u32 %s56, 1
        %s169 = scalar_lea.sflag [#allocation6], %s168
        %s170 = sand.u32 %s56, 1
        %s171 = smul.addr %s170, 8
        %s172 = scalar_lea.vmem [#allocation5], %s171
        // Predicated region
        $region33: #{tpu_custom_call.1} parent=27 // pred_check
          %p173 = pneg %p69
        $region34: #{tpu_custom_call.1} parent=27 // pred_check_branch
          %175 = sbr.rel (%p173) target = $region36
        $region35: #{tpu_custom_call.1} parent=27 // pred_region
          %176 = dma.done %s169, 128
        $region36: #{tpu_custom_call.1} parent=27 // pred_fallthru
          _
        %s177 = sand.u32 %s30, 1
        %s178 = scalar_lea.sflag [#allocation3], %s177
        %s179 = sand.u32 %s30, 1
        %s180 = smul.addr %s179, 8
        %s181 = scalar_lea.vmem [#allocation2], %s180
        %p182 = pneg %p43
        %p183 = pneg %p40
        %s184 = sand.u32 %s56, 1
        %s185 = scalar_lea.sflag [#allocation6], %s184
        %s186 = sand.u32 %s56, 1
        %s187 = smul.addr %s186, 8
        %s188 = scalar_lea.vmem [#allocation5], %s187
        %p189 = pneg %p69
        %p190 = pneg %p66
        %p191 = pneg %p95
        %p192 = pneg %p92
        %s193 = sand.u32 %s82, 1
        %s194 = scalar_lea.sflag [#allocation4], %s193
        %s195 = sand.u32 %s82, 1
        %s196 = smul.addr %s195, 8
        %s197 = scalar_lea.vmem [#allocation7], %s196
        %v198 = vld [vmem:[%s163] sm:$0xff]
        %v199 = vld [vmem:[%s172] sm:$0xff]
        %v201 = vcombine.high %v199, %v199
        %vm203 = vcmask 1043456
        %v204 = vsel %vm203, %v199, 0.0
        %v205 = vsel %vm203, %v201, 0.0
        %v206 = vadd.f32 %v204, %v205
        %207 = vadd.xlane.f32.xlu0 %v206
        %v208 = vpop.xlane.xlu0 %207
        %v209 = vrcp.pop 256.0
        %v210 = vmul.f32 %v208, %v209
        %v213 = vunpack.c.l.s4 839922192
        %v214 = vunpack.c.0.s8 %v213
        %v215 = vlaneseq
        %v216 = vshrl.u32 %v215, 7
        %v217 = vsub.s32 %v214, %v216
        %v218 = vrot.slane %v210, %v217
        %v220 = vsub.f32 %v198, %v218
        %v221 = vsub.f32 %v199, %v218
        %v222 = vmul.f32 %v220, %v220
        %v224 = vcombine.high %v222, %v222
        %v226 = vsel %vm203, %v222, 0.0
        %v227 = vrot.slane %v226, 4
        %v228 = vadd.f32 %v226, %v227
        %v229 = vrot.slane %v228, 2
        %v230 = vadd.f32 %v228, %v229
        %v231 = vrot.slane %v230, 1
        %v232 = vadd.f32 %v230, %v231
        %v233 = vsel %vm203, %v224, 0.0
        %v234 = vrot.slane %v233, 4
        %v235 = vadd.f32 %v233, %v234
        %v236 = vrot.slane %v235, 2
        %v237 = vadd.f32 %v235, %v236
        %v238 = vrot.slane %v237, 1
        %v239 = vadd.f32 %v237, %v238
        %v240 = vrsqrt.pop %v232
        %v241 = vrsqrt.pop %v239
        %v244 = vcombine.low %v240, %v241
        %v246 = vmul.f32 %v220, %v244
        %v247 = vmul.f32 %v221, %v221
        %v249 = vcombine.high %v247, %v247
        %v251 = vsel %vm203, %v247, 0.0
        %v252 = vrot.slane %v251, 4
        %v253 = vadd.f32 %v251, %v252
        %v254 = vrot.slane %v253, 2
        %v255 = vadd.f32 %v253, %v254
        %v256 = vrot.slane %v255, 1
        %v257 = vadd.f32 %v255, %v256
        %v258 = vsel %vm203, %v249, 0.0
        %v259 = vrot.slane %v258, 4
        %v260 = vadd.f32 %v258, %v259
        %v261 = vrot.slane %v260, 2
        %v262 = vadd.f32 %v260, %v261
        %v263 = vrot.slane %v262, 1
        %v264 = vadd.f32 %v262, %v263
        %v265 = vrsqrt.pop %v257
        %v266 = vrsqrt.pop %v264
        %v269 = vcombine.low %v265, %v266
        %v271 = vmul.f32 %v221, %v269
        %v273 = vcombine.high %v246, %v246
        %275 = vxpose.xlu0.b32.start [1/16] %v246, 128
        %276 = vxpose.xlu0.b32.cont [2/16] 0.0, 128
        %277 = vxpose.xlu0.b32.cont [3/16] 0.0, 128
        %278 = vxpose.xlu0.b32.cont [4/16] 0.0, 128
        %279 = vxpose.xlu0.b32.cont [5/16] 0.0, 128
        %280 = vxpose.xlu0.b32.cont [6/16] 0.0, 128
        %281 = vxpose.xlu0.b32.cont [7/16] 0.0, 128
        %282 = vxpose.xlu0.b32.cont [8/16] 0.0, 128
        %283 = vxpose.xlu0.b32.cont [9/16] 0.0, 128
        %284 = vxpose.xlu0.b32.cont [10/16] 0.0, 128
        %285 = vxpose.xlu0.b32.cont [11/16] 0.0, 128
        %286 = vxpose.xlu0.b32.cont [12/16] 0.0, 128
        %287 = vxpose.xlu0.b32.cont [13/16] 0.0, 128
        %288 = vxpose.xlu0.b32.cont [14/16] 0.0, 128
        %289 = vxpose.xlu0.b32.cont [15/16] 0.0, 128
        %290 = vxpose.xlu0.b32.end [16/16] 0.0, 128
        %v291 = vpop.trf.xlu0
        %v292 = vpop.trf.xlu0
        %v293 = vpop.trf.xlu0
        %v294 = vpop.trf.xlu0
        %v295 = vpop.trf.xlu0
        %v296 = vpop.trf.xlu0
        %v297 = vpop.trf.xlu0
        %v298 = vpop.trf.xlu0
        %v299 = vpop.trf.xlu0
        %v300 = vpop.trf.xlu0
        %v301 = vpop.trf.xlu0
        %v302 = vpop.trf.xlu0
        %v303 = vpop.trf.xlu0
        %v304 = vpop.trf.xlu0
        %v305 = vpop.trf.xlu0
        %v306 = vpop.trf.xlu0
        %307 = vxpose.xlu0.b32.start [1/16] %v273, 128
        %308 = vxpose.xlu0.b32.cont [2/16] 0.0, 128
        %309 = vxpose.xlu0.b32.cont [3/16] 0.0, 128
        %310 = vxpose.xlu0.b32.cont [4/16] 0.0, 128
        %311 = vxpose.xlu0.b32.cont [5/16] 0.0, 128
        %312 = vxpose.xlu0.b32.cont [6/16] 0.0, 128
        %313 = vxpose.xlu0.b32.cont [7/16] 0.0, 128
        %314 = vxpose.xlu0.b32.cont [8/16] 0.0, 128
        %315 = vxpose.xlu0.b32.cont [9/16] 0.0, 128
        %316 = vxpose.xlu0.b32.cont [10/16] 0.0, 128
        %317 = vxpose.xlu0.b32.cont [11/16] 0.0, 128
        %318 = vxpose.xlu0.b32.cont [12/16] 0.0, 128
        %319 = vxpose.xlu0.b32.cont [13/16] 0.0, 128
        %320 = vxpose.xlu0.b32.cont [14/16] 0.0, 128
        %321 = vxpose.xlu0.b32.cont [15/16] 0.0, 128
        %322 = vxpose.xlu0.b32.end [16/16] 0.0, 128
        %v323 = vpop.trf.xlu0
        %v324 = vpop.trf.xlu0
        %v325 = vpop.trf.xlu0
        %v326 = vpop.trf.xlu0
        %v327 = vpop.trf.xlu0
        %v328 = vpop.trf.xlu0
        %v329 = vpop.trf.xlu0
        %v330 = vpop.trf.xlu0
        %v331 = vpop.trf.xlu0
        %v332 = vpop.trf.xlu0
        %v333 = vpop.trf.xlu0
        %v334 = vpop.trf.xlu0
        %v335 = vpop.trf.xlu0
        %v336 = vpop.trf.xlu0
        %v337 = vpop.trf.xlu0
        %v338 = vpop.trf.xlu0
        %v340 = vcombine.high %v271, %v271
        %vm341 = vcmask 31744
        %v343 = vsel %vm341, %v291, 0
        %v346 = vsel %vm341, %v292, 0
        %v349 = vsel %vm341, %v293, 0
        %v352 = vsel %vm341, %v294, 0
        %v355 = vsel %vm341, %v295, 0
        %v358 = vsel %vm341, %v296, 0
        %v361 = vsel %vm341, %v297, 0
        %v364 = vsel %vm341, %v298, 0
        %v367 = vsel %vm341, %v299, 0
        %v370 = vsel %vm341, %v300, 0
        %v373 = vsel %vm341, %v301, 0
        %v376 = vsel %vm341, %v302, 0
        %v379 = vsel %vm341, %v303, 0
        %v382 = vsel %vm341, %v304, 0
        %v385 = vsel %vm341, %v305, 0
        %v388 = vsel %vm341, %v306, 0
        %v391 = vsel %vm341, %v323, 0
        %v394 = vsel %vm341, %v324, 0
        %v397 = vsel %vm341, %v325, 0
        %v400 = vsel %vm341, %v326, 0
        %v403 = vsel %vm341, %v327, 0
        %v406 = vsel %vm341, %v328, 0
        %v409 = vsel %vm341, %v329, 0
        %v412 = vsel %vm341, %v330, 0
        %v415 = vsel %vm341, %v331, 0
        %v418 = vsel %vm341, %v332, 0
        %v421 = vsel %vm341, %v333, 0
        %v424 = vsel %vm341, %v334, 0
        %v427 = vsel %vm341, %v335, 0
        %v430 = vsel %vm341, %v336, 0
        %v433 = vsel %vm341, %v337, 0
        %v436 = vsel %vm341, %v338, 0
        %v438 = vsel %vm203, %v271, 0
        %v440 = vsel %vm203, %v340, 0
        %442 = vmatprep.subr.mxu0 0.0
        %443 = vmatpush1.msra.mxu0 0.0
        %444 = vmatprep.subr.mxu0 0.0
        %445 = vmatpush1.msra.mxu0 0.0
        %446 = vmatprep.subr.mxu0 0.0
        %447 = vmatpush1.msra.mxu0 0.0
        %448 = vmatprep.subr.mxu0 0.0
        %449 = vmatpush1.msra.mxu0 0.0
        %450 = vmatprep.subr.mxu0 0.0
        %451 = vmatpush1.msra.mxu0 0.0
        %452 = vmatprep.subr.mxu0 0.0
        %453 = vmatpush1.msra.mxu0 0.0
        %454 = vmatprep.subr.mxu0 0.0
        %455 = vmatpush1.msra.mxu0 0.0
        %456 = vmatprep.subr.mxu0 0.0
        %457 = vmatpush1.msra.mxu0 0.0
        %458 = vmatprep.subr.mxu0 0.0
        %459 = vmatpush1.msra.mxu0 0.0
        %460 = vmatprep.subr.mxu0 0.0
        %461 = vmatpush1.msra.mxu0 0.0
        %462 = vmatprep.subr.mxu0 0.0
        %463 = vmatpush1.msra.mxu0 0.0
        %464 = vmatprep.subr.mxu0 0.0
        %465 = vmatpush1.msra.mxu0 0.0
        %466 = vmatprep.subr.mxu0 0.0
        %467 = vmatpush1.msra.mxu0 0.0
        %468 = vmatprep.subr.mxu0 0.0
        %469 = vmatpush1.msra.mxu0 0.0
        %470 = vmatprep.subr.mxu0 0.0
        %471 = vmatpush1.msra.mxu0 0.0
        %472 = vmatprep.subr.mxu0 %v440
        %473 = vmatpush1.msra.mxu0 %v438
        %474 = vmatprep.subr.mxu0 0.0
        %475 = vmatpush2.msra.mxu0 0.0
        %476 = vmatprep.subr.mxu0 0.0
        %477 = vmatpush2.msra.mxu0 0.0
        %478 = vmatprep.subr.mxu0 0.0
        %479 = vmatpush2.msra.mxu0 0.0
        %480 = vmatprep.subr.mxu0 0.0
        %481 = vmatpush2.msra.mxu0 0.0
        %482 = vmatprep.subr.mxu0 0.0
        %483 = vmatpush2.msra.mxu0 0.0
        %484 = vmatprep.subr.mxu0 0.0
        %485 = vmatpush2.msra.mxu0 0.0
        %486 = vmatprep.subr.mxu0 0.0
        %487 = vmatpush2.msra.mxu0 0.0
        %488 = vmatprep.subr.mxu0 0.0
        %489 = vmatpush2.msra.mxu0 0.0
        %490 = vmatprep.subr.mxu0 0.0
        %491 = vmatpush2.msra.mxu0 0.0
        %492 = vmatprep.subr.mxu0 0.0
        %493 = vmatpush2.msra.mxu0 0.0
        %494 = vmatprep.subr.mxu0 0.0
        %495 = vmatpush2.msra.mxu0 0.0
        %496 = vmatprep.subr.mxu0 0.0
        %497 = vmatpush2.msra.mxu0 0.0
        %498 = vmatprep.subr.mxu0 0.0
        %499 = vmatpush2.msra.mxu0 0.0
        %500 = vmatprep.subr.mxu0 0.0
        %501 = vmatpush2.msra.mxu0 0.0
        %502 = vmatprep.subr.mxu0 0.0
        %503 = vmatpush2.msra.mxu0 0.0
        %504 = vmatprep.subr.mxu0 0.0
        %505 = vmatpush2.msra.mxu0 0.0
        %506 = vmatprep.mubr.f32.mxu0 0.0
        %507 = vmatmul.mubr.f32.gmra.mxu0 %v343
        %v508 = vpop.f32.mrf.mxu0
        %v509 = vadd.f32 0.0, %v508
        %v510 = vpop.f32.mrf.mxu0
        %v511 = vadd.f32 0.0, %v510
        %512 = vmatprep.mubr.f32.mxu0 0.0
        %513 = vmatmul.mubr.f32.gmra.mxu0 %v346
        %v514 = vpop.f32.mrf.mxu0
        %v515 = vadd.f32 0.0, %v514
        %v516 = vpop.f32.mrf.mxu0
        %v517 = vadd.f32 0.0, %v516
        %518 = vmatprep.mubr.f32.mxu0 0.0
        %519 = vmatmul.mubr.f32.gmra.mxu0 %v349
        %v520 = vpop.f32.mrf.mxu0
        %v521 = vadd.f32 0.0, %v520
        %v522 = vpop.f32.mrf.mxu0
        %v523 = vadd.f32 0.0, %v522
        %524 = vmatprep.mubr.f32.mxu0 0.0
        %525 = vmatmul.mubr.f32.gmra.mxu0 %v352
        %v526 = vpop.f32.mrf.mxu0
        %v527 = vadd.f32 0.0, %v526
        %v528 = vpop.f32.mrf.mxu0
        %v529 = vadd.f32 0.0, %v528
        %530 = vmatprep.mubr.f32.mxu0 0.0
        %531 = vmatmul.mubr.f32.gmra.mxu0 %v355
        %v532 = vpop.f32.mrf.mxu0
        %v533 = vadd.f32 0.0, %v532
        %v534 = vpop.f32.mrf.mxu0
        %v535 = vadd.f32 0.0, %v534
        %536 = vmatprep.mubr.f32.mxu0 0.0
        %537 = vmatmul.mubr.f32.gmra.mxu0 %v358
        %v538 = vpop.f32.mrf.mxu0
        %v539 = vadd.f32 0.0, %v538
        %v540 = vpop.f32.mrf.mxu0
        %v541 = vadd.f32 0.0, %v540
        %542 = vmatprep.mubr.f32.mxu0 0.0
        %543 = vmatmul.mubr.f32.gmra.mxu0 %v361
        %v544 = vpop.f32.mrf.mxu0
        %v545 = vadd.f32 0.0, %v544
        %v546 = vpop.f32.mrf.mxu0
        %v547 = vadd.f32 0.0, %v546
        %548 = vmatprep.mubr.f32.mxu0 0.0
        %549 = vmatmul.mubr.f32.gmra.mxu0 %v364
        %v550 = vpop.f32.mrf.mxu0
        %v551 = vadd.f32 0.0, %v550
        %v552 = vpop.f32.mrf.mxu0
        %v553 = vadd.f32 0.0, %v552
        %554 = vmatprep.mubr.f32.mxu0 0.0
        %555 = vmatmul.mubr.f32.gmra.mxu0 %v367
        %v556 = vpop.f32.mrf.mxu0
        %v557 = vadd.f32 0.0, %v556
        %v558 = vpop.f32.mrf.mxu0
        %v559 = vadd.f32 0.0, %v558
        %560 = vmatprep.mubr.f32.mxu0 0.0
        %561 = vmatmul.mubr.f32.gmra.mxu0 %v370
        %v562 = vpop.f32.mrf.mxu0
        %v563 = vadd.f32 0.0, %v562
        %v564 = vpop.f32.mrf.mxu0
        %v565 = vadd.f32 0.0, %v564
        %566 = vmatprep.mubr.f32.mxu0 0.0
        %567 = vmatmul.mubr.f32.gmra.mxu0 %v373
        %v568 = vpop.f32.mrf.mxu0
        %v569 = vadd.f32 0.0, %v568
        %v570 = vpop.f32.mrf.mxu0
        %v571 = vadd.f32 0.0, %v570
        %572 = vmatprep.mubr.f32.mxu0 0.0
        %573 = vmatmul.mubr.f32.gmra.mxu0 %v376
        %v574 = vpop.f32.mrf.mxu0
        %v575 = vadd.f32 0.0, %v574
        %v576 = vpop.f32.mrf.mxu0
        %v577 = vadd.f32 0.0, %v576
        %578 = vmatprep.mubr.f32.mxu0 0.0
        %579 = vmatmul.mubr.f32.gmra.mxu0 %v379
        %v580 = vpop.f32.mrf.mxu0
        %v581 = vadd.f32 0.0, %v580
        %v582 = vpop.f32.mrf.mxu0
        %v583 = vadd.f32 0.0, %v582
        %584 = vmatprep.mubr.f32.mxu0 0.0
        %585 = vmatmul.mubr.f32.gmra.mxu0 %v382
        %v586 = vpop.f32.mrf.mxu0
        %v587 = vadd.f32 0.0, %v586
        %v588 = vpop.f32.mrf.mxu0
        %v589 = vadd.f32 0.0, %v588
        %590 = vmatprep.mubr.f32.mxu0 0.0
        %591 = vmatmul.mubr.f32.gmra.mxu0 %v385
        %v592 = vpop.f32.mrf.mxu0
        %v593 = vadd.f32 0.0, %v592
        %v594 = vpop.f32.mrf.mxu0
        %v595 = vadd.f32 0.0, %v594
        %596 = vmatprep.mubr.f32.mxu0 0.0
        %597 = vmatmul.mubr.f32.gmra.mxu0 %v388
        %v598 = vpop.f32.mrf.mxu0
        %v599 = vadd.f32 0.0, %v598
        %v600 = vpop.f32.mrf.mxu0
        %v601 = vadd.f32 0.0, %v600
        %602 = vmatprep.mubr.f32.mxu0 0.0
        %603 = vmatmul.mubr.f32.gmra.mxu0 %v391
        %v604 = vpop.f32.mrf.mxu0
        %v605 = vadd.f32 0.0, %v604
        %v606 = vpop.f32.mrf.mxu0
        %v607 = vadd.f32 0.0, %v606
        %608 = vmatprep.mubr.f32.mxu0 0.0
        %609 = vmatmul.mubr.f32.gmra.mxu0 %v394
        %v610 = vpop.f32.mrf.mxu0
        %v611 = vadd.f32 0.0, %v610
        %v612 = vpop.f32.mrf.mxu0
        %v613 = vadd.f32 0.0, %v612
        %614 = vmatprep.mubr.f32.mxu0 0.0
        %615 = vmatmul.mubr.f32.gmra.mxu0 %v397
        %v616 = vpop.f32.mrf.mxu0
        %v617 = vadd.f32 0.0, %v616
        %v618 = vpop.f32.mrf.mxu0
        %v619 = vadd.f32 0.0, %v618
        %620 = vmatprep.mubr.f32.mxu0 0.0
        %621 = vmatmul.mubr.f32.gmra.mxu0 %v400
        %v622 = vpop.f32.mrf.mxu0
        %v623 = vadd.f32 0.0, %v622
        %v624 = vpop.f32.mrf.mxu0
        %v625 = vadd.f32 0.0, %v624
        %626 = vmatprep.mubr.f32.mxu0 0.0
        %627 = vmatmul.mubr.f32.gmra.mxu0 %v403
        %v628 = vpop.f32.mrf.mxu0
        %v629 = vadd.f32 0.0, %v628
        %v630 = vpop.f32.mrf.mxu0
        %v631 = vadd.f32 0.0, %v630
        %632 = vmatprep.mubr.f32.mxu0 0.0
        %633 = vmatmul.mubr.f32.gmra.mxu0 %v406
        %v634 = vpop.f32.mrf.mxu0
        %v635 = vadd.f32 0.0, %v634
        %v636 = vpop.f32.mrf.mxu0
        %v637 = vadd.f32 0.0, %v636
        %638 = vmatprep.mubr.f32.mxu0 0.0
        %639 = vmatmul.mubr.f32.gmra.mxu0 %v409
        %v640 = vpop.f32.mrf.mxu0
        %v641 = vadd.f32 0.0, %v640
        %v642 = vpop.f32.mrf.mxu0
        %v643 = vadd.f32 0.0, %v642
        %644 = vmatprep.mubr.f32.mxu0 0.0
        %645 = vmatmul.mubr.f32.gmra.mxu0 %v412
        %v646 = vpop.f32.mrf.mxu0
        %v647 = vadd.f32 0.0, %v646
        %v648 = vpop.f32.mrf.mxu0
        %v649 = vadd.f32 0.0, %v648
        %650 = vmatprep.mubr.f32.mxu0 0.0
        %651 = vmatmul.mubr.f32.gmra.mxu0 %v415
        %v652 = vpop.f32.mrf.mxu0
        %v653 = vadd.f32 0.0, %v652
        %v654 = vpop.f32.mrf.mxu0
        %v655 = vadd.f32 0.0, %v654
        %656 = vmatprep.mubr.f32.mxu0 0.0
        %657 = vmatmul.mubr.f32.gmra.mxu0 %v418
        %v658 = vpop.f32.mrf.mxu0
        %v659 = vadd.f32 0.0, %v658
        %v660 = vpop.f32.mrf.mxu0
        %v661 = vadd.f32 0.0, %v660
        %662 = vmatprep.mubr.f32.mxu0 0.0
        %663 = vmatmul.mubr.f32.gmra.mxu0 %v421
        %v664 = vpop.f32.mrf.mxu0
        %v665 = vadd.f32 0.0, %v664
        %v666 = vpop.f32.mrf.mxu0
        %v667 = vadd.f32 0.0, %v666
        %668 = vmatprep.mubr.f32.mxu0 0.0
        %669 = vmatmul.mubr.f32.gmra.mxu0 %v424
        %v670 = vpop.f32.mrf.mxu0
        %v671 = vadd.f32 0.0, %v670
        %v672 = vpop.f32.mrf.mxu0
        %v673 = vadd.f32 0.0, %v672
        %674 = vmatprep.mubr.f32.mxu0 0.0
        %675 = vmatmul.mubr.f32.gmra.mxu0 %v427
        %v676 = vpop.f32.mrf.mxu0
        %v677 = vadd.f32 0.0, %v676
        %v678 = vpop.f32.mrf.mxu0
        %v679 = vadd.f32 0.0, %v678
        %680 = vmatprep.mubr.f32.mxu0 0.0
        %681 = vmatmul.mubr.f32.gmra.mxu0 %v430
        %v682 = vpop.f32.mrf.mxu0
        %v683 = vadd.f32 0.0, %v682
        %v684 = vpop.f32.mrf.mxu0
        %v685 = vadd.f32 0.0, %v684
        %686 = vmatprep.mubr.f32.mxu0 0.0
        %687 = vmatmul.mubr.f32.gmra.mxu0 %v433
        %v688 = vpop.f32.mrf.mxu0
        %v689 = vadd.f32 0.0, %v688
        %v690 = vpop.f32.mrf.mxu0
        %v691 = vadd.f32 0.0, %v690
        %692 = vmatprep.mubr.f32.mxu0 0.0
        %693 = vmatmul.mubr.f32.gmra.mxu0 %v436
        %v694 = vpop.f32.mrf.mxu0
        %v695 = vadd.f32 0.0, %v694
        %v696 = vpop.f32.mrf.mxu0
        %v697 = vadd.f32 0.0, %v696
        %698 = vdwg.mxu0
        %v699 = vsub.f32 1.0, %v509
        %v700 = vsub.f32 1.0, %v511
        %v701 = vsub.f32 1.0, %v515
        %v702 = vsub.f32 1.0, %v517
        %v703 = vsub.f32 1.0, %v521
        %v704 = vsub.f32 1.0, %v523
        %v705 = vsub.f32 1.0, %v527
        %v706 = vsub.f32 1.0, %v529
        %v707 = vsub.f32 1.0, %v533
        %v708 = vsub.f32 1.0, %v535
        %v709 = vsub.f32 1.0, %v539
        %v710 = vsub.f32 1.0, %v541
        %v711 = vsub.f32 1.0, %v545
        %v712 = vsub.f32 1.0, %v547
        %v713 = vsub.f32 1.0, %v551
        %v714 = vsub.f32 1.0, %v553
        %v715 = vsub.f32 1.0, %v557
        %v716 = vsub.f32 1.0, %v559
        %v717 = vsub.f32 1.0, %v563
        %v718 = vsub.f32 1.0, %v565
        %v719 = vsub.f32 1.0, %v569
        %v720 = vsub.f32 1.0, %v571
        %v721 = vsub.f32 1.0, %v575
        %v722 = vsub.f32 1.0, %v577
        %v723 = vsub.f32 1.0, %v581
        %v724 = vsub.f32 1.0, %v583
        %v725 = vsub.f32 1.0, %v587
        %v726 = vsub.f32 1.0, %v589
        %v727 = vsub.f32 1.0, %v593
        %v728 = vsub.f32 1.0, %v595
        %v729 = vsub.f32 1.0, %v599
        %v730 = vsub.f32 1.0, %v601
        %v731 = vsub.f32 1.0, %v605
        %v732 = vsub.f32 1.0, %v607
        %v733 = vsub.f32 1.0, %v611
        %v734 = vsub.f32 1.0, %v613
        %v735 = vsub.f32 1.0, %v617
        %v736 = vsub.f32 1.0, %v619
        %v737 = vsub.f32 1.0, %v623
        %v738 = vsub.f32 1.0, %v625
        %v739 = vsub.f32 1.0, %v629
        %v740 = vsub.f32 1.0, %v631
        %v741 = vsub.f32 1.0, %v635
        %v742 = vsub.f32 1.0, %v637
        %v743 = vsub.f32 1.0, %v641
        %v744 = vsub.f32 1.0, %v643
        %v745 = vsub.f32 1.0, %v647
        %v746 = vsub.f32 1.0, %v649
        %v747 = vsub.f32 1.0, %v653
        %v748 = vsub.f32 1.0, %v655
        %v749 = vsub.f32 1.0, %v659
        %v750 = vsub.f32 1.0, %v661
        %v751 = vsub.f32 1.0, %v665
        %v752 = vsub.f32 1.0, %v667
        %v753 = vsub.f32 1.0, %v671
        %v754 = vsub.f32 1.0, %v673
        %v755 = vsub.f32 1.0, %v677
        %v756 = vsub.f32 1.0, %v679
        %v757 = vsub.f32 1.0, %v683
        %v758 = vsub.f32 1.0, %v685
        %v759 = vsub.f32 1.0, %v689
        %v760 = vsub.f32 1.0, %v691
        %v761 = vsub.f32 1.0, %v695
        %v762 = vsub.f32 1.0, %v697
        %v763 = vmin.f32 %v699, %v700
        %764 = vmin.xlane.f32.xlu0 %v763
        %v765 = vpop.xlane.xlu0 %764
        %v766 = vmin.f32 %v701, %v702
        %767 = vmin.xlane.f32.xlu0 %v766
        %v768 = vpop.xlane.xlu0 %767
        %v769 = vmin.f32 %v703, %v704
        %770 = vmin.xlane.f32.xlu0 %v769
        %v771 = vpop.xlane.xlu0 %770
        %v772 = vmin.f32 %v705, %v706
        %773 = vmin.xlane.f32.xlu0 %v772
        %v774 = vpop.xlane.xlu0 %773
        %v775 = vmin.f32 %v707, %v708
        %776 = vmin.xlane.f32.xlu0 %v775
        %v777 = vpop.xlane.xlu0 %776
        %v778 = vmin.f32 %v709, %v710
        %779 = vmin.xlane.f32.xlu0 %v778
        %v780 = vpop.xlane.xlu0 %779
        %v781 = vmin.f32 %v711, %v712
        %782 = vmin.xlane.f32.xlu0 %v781
        %v783 = vpop.xlane.xlu0 %782
        %v784 = vmin.f32 %v713, %v714
        %785 = vmin.xlane.f32.xlu0 %v784
        %v786 = vpop.xlane.xlu0 %785
        %v787 = vmin.f32 %v715, %v716
        %788 = vmin.xlane.f32.xlu0 %v787
        %v789 = vpop.xlane.xlu0 %788
        %v790 = vmin.f32 %v717, %v718
        %791 = vmin.xlane.f32.xlu0 %v790
        %v792 = vpop.xlane.xlu0 %791
        %v793 = vmin.f32 %v719, %v720
        %794 = vmin.xlane.f32.xlu0 %v793
        %v795 = vpop.xlane.xlu0 %794
        %v796 = vmin.f32 %v721, %v722
        %797 = vmin.xlane.f32.xlu0 %v796
        %v798 = vpop.xlane.xlu0 %797
        %v799 = vmin.f32 %v723, %v724
        %800 = vmin.xlane.f32.xlu0 %v799
        %v801 = vpop.xlane.xlu0 %800
        %v802 = vmin.f32 %v725, %v726
        %803 = vmin.xlane.f32.xlu0 %v802
        %v804 = vpop.xlane.xlu0 %803
        %v805 = vmin.f32 %v727, %v728
        %806 = vmin.xlane.f32.xlu0 %v805
        %v807 = vpop.xlane.xlu0 %806
        %v808 = vmin.f32 %v729, %v730
        %809 = vmin.xlane.f32.xlu0 %v808
        %v810 = vpop.xlane.xlu0 %809
        %v811 = vmin.f32 %v731, %v732
        %812 = vmin.xlane.f32.xlu0 %v811
        %v813 = vpop.xlane.xlu0 %812
        %v814 = vmin.f32 %v733, %v734
        %815 = vmin.xlane.f32.xlu0 %v814
        %v816 = vpop.xlane.xlu0 %815
        %v817 = vmin.f32 %v735, %v736
        %818 = vmin.xlane.f32.xlu0 %v817
        %v819 = vpop.xlane.xlu0 %818
        %v820 = vmin.f32 %v737, %v738
        %821 = vmin.xlane.f32.xlu0 %v820
        %v822 = vpop.xlane.xlu0 %821
        %v823 = vmin.f32 %v739, %v740
        %824 = vmin.xlane.f32.xlu0 %v823
        %v825 = vpop.xlane.xlu0 %824
        %v826 = vmin.f32 %v741, %v742
        %827 = vmin.xlane.f32.xlu0 %v826
        %v828 = vpop.xlane.xlu0 %827
        %v829 = vmin.f32 %v743, %v744
        %830 = vmin.xlane.f32.xlu0 %v829
        %v831 = vpop.xlane.xlu0 %830
        %v832 = vmin.f32 %v745, %v746
        %833 = vmin.xlane.f32.xlu0 %v832
        %v834 = vpop.xlane.xlu0 %833
        %v835 = vmin.f32 %v747, %v748
        %836 = vmin.xlane.f32.xlu0 %v835
        %v837 = vpop.xlane.xlu0 %836
        %v838 = vmin.f32 %v749, %v750
        %839 = vmin.xlane.f32.xlu0 %v838
        %v840 = vpop.xlane.xlu0 %839
        %v841 = vmin.f32 %v751, %v752
        %842 = vmin.xlane.f32.xlu0 %v841
        %v843 = vpop.xlane.xlu0 %842
        %v844 = vmin.f32 %v753, %v754
        %845 = vmin.xlane.f32.xlu0 %v844
        %v846 = vpop.xlane.xlu0 %845
        %v847 = vmin.f32 %v755, %v756
        %848 = vmin.xlane.f32.xlu0 %v847
        %v849 = vpop.xlane.xlu0 %848
        %v850 = vmin.f32 %v757, %v758
        %851 = vmin.xlane.f32.xlu0 %v850
        %v852 = vpop.xlane.xlu0 %851
        %v853 = vmin.f32 %v759, %v760
        %854 = vmin.xlane.f32.xlu0 %v853
        %v855 = vpop.xlane.xlu0 %854
        %v856 = vmin.f32 %v761, %v762
        %857 = vmin.xlane.f32.xlu0 %v856
        %v858 = vpop.xlane.xlu0 %857
        %v859 = vadd.f32 %v765, 1e-05
        %v860 = vadd.f32 %v768, 1e-05
        %v861 = vadd.f32 %v771, 1e-05
        %v862 = vadd.f32 %v774, 1e-05
        %v863 = vadd.f32 %v777, 1e-05
        %v864 = vadd.f32 %v780, 1e-05
        %v865 = vadd.f32 %v783, 1e-05
        %v866 = vadd.f32 %v786, 1e-05
        %v867 = vadd.f32 %v789, 1e-05
        %v868 = vadd.f32 %v792, 1e-05
        %v869 = vadd.f32 %v795, 1e-05
        %v870 = vadd.f32 %v798, 1e-05
        %v871 = vadd.f32 %v801, 1e-05
        %v872 = vadd.f32 %v804, 1e-05
        %v873 = vadd.f32 %v807, 1e-05
        %v874 = vadd.f32 %v810, 1e-05
        %v875 = vadd.f32 %v813, 1e-05
        %v876 = vadd.f32 %v816, 1e-05
        %v877 = vadd.f32 %v819, 1e-05
        %v878 = vadd.f32 %v822, 1e-05
        %v879 = vadd.f32 %v825, 1e-05
        %v880 = vadd.f32 %v828, 1e-05
        %v881 = vadd.f32 %v831, 1e-05
        %v882 = vadd.f32 %v834, 1e-05
        %v883 = vadd.f32 %v837, 1e-05
        %v884 = vadd.f32 %v840, 1e-05
        %v885 = vadd.f32 %v843, 1e-05
        %v886 = vadd.f32 %v846, 1e-05
        %v887 = vadd.f32 %v849, 1e-05
        %v888 = vadd.f32 %v852, 1e-05
        %v889 = vadd.f32 %v855, 1e-05
        %v890 = vadd.f32 %v858, 1e-05
        %v891 = vmul.f32 %v859, 0.1
        %v892 = vmul.f32 %v860, 0.1
        %v893 = vmul.f32 %v861, 0.1
        %v894 = vmul.f32 %v862, 0.1
        %v895 = vmul.f32 %v863, 0.1
        %v896 = vmul.f32 %v864, 0.1
        %v897 = vmul.f32 %v865, 0.1
        %v898 = vmul.f32 %v866, 0.1
        %v899 = vmul.f32 %v867, 0.1
        %v900 = vmul.f32 %v868, 0.1
        %v901 = vmul.f32 %v869, 0.1
        %v902 = vmul.f32 %v870, 0.1
        %v903 = vmul.f32 %v871, 0.1
        %v904 = vmul.f32 %v872, 0.1
        %v905 = vmul.f32 %v873, 0.1
        %v906 = vmul.f32 %v874, 0.1
        %v907 = vmul.f32 %v875, 0.1
        %v908 = vmul.f32 %v876, 0.1
        %v909 = vmul.f32 %v877, 0.1
        %v910 = vmul.f32 %v878, 0.1
        %v911 = vmul.f32 %v879, 0.1
        %v912 = vmul.f32 %v880, 0.1
        %v913 = vmul.f32 %v881, 0.1
        %v914 = vmul.f32 %v882, 0.1
        %v915 = vmul.f32 %v883, 0.1
        %v916 = vmul.f32 %v884, 0.1
        %v917 = vmul.f32 %v885, 0.1
        %v918 = vmul.f32 %v886, 0.1
        %v919 = vmul.f32 %v887, 0.1
        %v920 = vmul.f32 %v888, 0.1
        %v921 = vmul.f32 %v889, 0.1
        %v922 = vmul.f32 %v890, 0.1
        %v923 = vrcp.pop %v891
        %v924 = vrcp.pop %v892
        %v925 = vrcp.pop %v893
        %v926 = vrcp.pop %v894
        %v927 = vrcp.pop %v895
        %v928 = vrcp.pop %v896
        %v929 = vrcp.pop %v897
        %v930 = vrcp.pop %v898
        %v931 = vrcp.pop %v899
        %v932 = vrcp.pop %v900
        %v933 = vrcp.pop %v901
        %v934 = vrcp.pop %v902
        %v935 = vrcp.pop %v903
        %v936 = vrcp.pop %v904
        %v937 = vrcp.pop %v905
        %v938 = vrcp.pop %v906
        %v939 = vrcp.pop %v907
        %v940 = vrcp.pop %v908
        %v941 = vrcp.pop %v909
        %v942 = vrcp.pop %v910
        %v943 = vrcp.pop %v911
        %v944 = vrcp.pop %v912
        %v945 = vrcp.pop %v913
        %v946 = vrcp.pop %v914
        %v947 = vrcp.pop %v915
        %v948 = vrcp.pop %v916
        %v949 = vrcp.pop %v917
        %v950 = vrcp.pop %v918
        %v951 = vrcp.pop %v919
        %v952 = vrcp.pop %v920
        %v953 = vrcp.pop %v921
        %v954 = vrcp.pop %v922
        %v955 = vsub.f32 0.0, %v923
        %v956 = vsub.f32 0.0, %v924
        %v957 = vsub.f32 0.0, %v925
        %v958 = vsub.f32 0.0, %v926
        %v959 = vsub.f32 0.0, %v927
        %v960 = vsub.f32 0.0, %v928
        %v961 = vsub.f32 0.0, %v929
        %v962 = vsub.f32 0.0, %v930
        %v963 = vsub.f32 0.0, %v931
        %v964 = vsub.f32 0.0, %v932
        %v965 = vsub.f32 0.0, %v933
        %v966 = vsub.f32 0.0, %v934
        %v967 = vsub.f32 0.0, %v935
        %v968 = vsub.f32 0.0, %v936
        %v969 = vsub.f32 0.0, %v937
        %v970 = vsub.f32 0.0, %v938
        %v971 = vsub.f32 0.0, %v939
        %v972 = vsub.f32 0.0, %v940
        %v973 = vsub.f32 0.0, %v941
        %v974 = vsub.f32 0.0, %v942
        %v975 = vsub.f32 0.0, %v943
        %v976 = vsub.f32 0.0, %v944
        %v977 = vsub.f32 0.0, %v945
        %v978 = vsub.f32 0.0, %v946
        %v979 = vsub.f32 0.0, %v947
        %v980 = vsub.f32 0.0, %v948
        %v981 = vsub.f32 0.0, %v949
        %v982 = vsub.f32 0.0, %v950
        %v983 = vsub.f32 0.0, %v951
        %v984 = vsub.f32 0.0, %v952
        %v985 = vsub.f32 0.0, %v953
        %v986 = vsub.f32 0.0, %v954
        %v987 = vmul.f32 %v699, %v955
        %v988 = vmul.f32 %v700, %v955
        %v989 = vmul.f32 %v701, %v956
        %v990 = vmul.f32 %v702, %v956
        %v991 = vmul.f32 %v703, %v957
        %v992 = vmul.f32 %v704, %v957
        %v993 = vmul.f32 %v705, %v958
        %v994 = vmul.f32 %v706, %v958
        %v995 = vmul.f32 %v707, %v959
        %v996 = vmul.f32 %v708, %v959
        %v997 = vmul.f32 %v709, %v960
        %v998 = vmul.f32 %v710, %v960
        %v999 = vmul.f32 %v711, %v961
        %v1000 = vmul.f32 %v712, %v961
        %v1001 = vmul.f32 %v713, %v962
        %v1002 = vmul.f32 %v714, %v962
        %v1003 = vmul.f32 %v715, %v963
        %v1004 = vmul.f32 %v716, %v963
        %v1005 = vmul.f32 %v717, %v964
        %v1006 = vmul.f32 %v718, %v964
        %v1007 = vmul.f32 %v719, %v965
        %v1008 = vmul.f32 %v720, %v965
        %v1009 = vmul.f32 %v721, %v966
        %v1010 = vmul.f32 %v722, %v966
        %v1011 = vmul.f32 %v723, %v967
        %v1012 = vmul.f32 %v724, %v967
        %v1013 = vmul.f32 %v725, %v968
        %v1014 = vmul.f32 %v726, %v968
        %v1015 = vmul.f32 %v727, %v969
        %v1016 = vmul.f32 %v728, %v969
        %v1017 = vmul.f32 %v729, %v970
        %v1018 = vmul.f32 %v730, %v970
        %v1019 = vmul.f32 %v731, %v971
        %v1020 = vmul.f32 %v732, %v971
        %v1021 = vmul.f32 %v733, %v972
        %v1022 = vmul.f32 %v734, %v972
        %v1023 = vmul.f32 %v735, %v973
        %v1024 = vmul.f32 %v736, %v973
        %v1025 = vmul.f32 %v737, %v974
        %v1026 = vmul.f32 %v738, %v974
        %v1027 = vmul.f32 %v739, %v975
        %v1028 = vmul.f32 %v740, %v975
        %v1029 = vmul.f32 %v741, %v976
        %v1030 = vmul.f32 %v742, %v976
        %v1031 = vmul.f32 %v743, %v977
        %v1032 = vmul.f32 %v744, %v977
        %v1033 = vmul.f32 %v745, %v978
        %v1034 = vmul.f32 %v746, %v978
        %v1035 = vmul.f32 %v747, %v979
        %v1036 = vmul.f32 %v748, %v979
        %v1037 = vmul.f32 %v749, %v980
        %v1038 = vmul.f32 %v750, %v980
        %v1039 = vmul.f32 %v751, %v981
        %v1040 = vmul.f32 %v752, %v981
        %v1041 = vmul.f32 %v753, %v982
        %v1042 = vmul.f32 %v754, %v982
        %v1043 = vmul.f32 %v755, %v983
        %v1044 = vmul.f32 %v756, %v983
        %v1045 = vmul.f32 %v757, %v984
        %v1046 = vmul.f32 %v758, %v984
        %v1047 = vmul.f32 %v759, %v985
        %v1048 = vmul.f32 %v760, %v985
        %v1049 = vmul.f32 %v761, %v986
        %v1050 = vmul.f32 %v762, %v986
        %v1051 = vmul.f32 %v987, 1.442695
        %v1052 = vpow.pop %v1051
        %v1053 = vmul.f32 %v988, 1.442695
        %v1054 = vpow.pop %v1053
        %v1055 = vmul.f32 %v989, 1.442695
        %v1056 = vpow.pop %v1055
        %v1057 = vmul.f32 %v990, 1.442695
        %v1058 = vpow.pop %v1057
        %v1059 = vmul.f32 %v991, 1.442695
        %v1060 = vpow.pop %v1059
        %v1061 = vmul.f32 %v992, 1.442695
        %v1062 = vpow.pop %v1061
        %v1063 = vmul.f32 %v993, 1.442695
        %v1064 = vpow.pop %v1063
        %v1065 = vmul.f32 %v994, 1.442695
        %v1066 = vpow.pop %v1065
        %v1067 = vmul.f32 %v995, 1.442695
        %v1068 = vpow.pop %v1067
        %v1069 = vmul.f32 %v996, 1.442695
        %v1070 = vpow.pop %v1069
        %v1071 = vmul.f32 %v997, 1.442695
        %v1072 = vpow.pop %v1071
        %v1073 = vmul.f32 %v998, 1.442695
        %v1074 = vpow.pop %v1073
        %v1075 = vmul.f32 %v999, 1.442695
        %v1076 = vpow.pop %v1075
        %v1077 = vmul.f32 %v1000, 1.442695
        %v1078 = vpow.pop %v1077
        %v1079 = vmul.f32 %v1001, 1.442695
        %v1080 = vpow.pop %v1079
        %v1081 = vmul.f32 %v1002, 1.442695
        %v1082 = vpow.pop %v1081
        %v1083 = vmul.f32 %v1003, 1.442695
        %v1084 = vpow.pop %v1083
        %v1085 = vmul.f32 %v1004, 1.442695
        %v1086 = vpow.pop %v1085
        %v1087 = vmul.f32 %v1005, 1.442695
        %v1088 = vpow.pop %v1087
        %v1089 = vmul.f32 %v1006, 1.442695
        %v1090 = vpow.pop %v1089
        %v1091 = vmul.f32 %v1007, 1.442695
        %v1092 = vpow.pop %v1091
        %v1093 = vmul.f32 %v1008, 1.442695
        %v1094 = vpow.pop %v1093
        %v1095 = vmul.f32 %v1009, 1.442695
        %v1096 = vpow.pop %v1095
        %v1097 = vmul.f32 %v1010, 1.442695
        %v1098 = vpow.pop %v1097
        %v1099 = vmul.f32 %v1011, 1.442695
        %v1100 = vpow.pop %v1099
        %v1101 = vmul.f32 %v1012, 1.442695
        %v1102 = vpow.pop %v1101
        %v1103 = vmul.f32 %v1013, 1.442695
        %v1104 = vpow.pop %v1103
        %v1105 = vmul.f32 %v1014, 1.442695
        %v1106 = vpow.pop %v1105
        %v1107 = vmul.f32 %v1015, 1.442695
        %v1108 = vpow.pop %v1107
        %v1109 = vmul.f32 %v1016, 1.442695
        %v1110 = vpow.pop %v1109
        %v1111 = vmul.f32 %v1017, 1.442695
        %v1112 = vpow.pop %v1111
        %v1113 = vmul.f32 %v1018, 1.442695
        %v1114 = vpow.pop %v1113
        %v1115 = vmul.f32 %v1019, 1.442695
        %v1116 = vpow.pop %v1115
        %v1117 = vmul.f32 %v1020, 1.442695
        %v1118 = vpow.pop %v1117
        %v1119 = vmul.f32 %v1021, 1.442695
        %v1120 = vpow.pop %v1119
        %v1121 = vmul.f32 %v1022, 1.442695
        %v1122 = vpow.pop %v1121
        %v1123 = vmul.f32 %v1023, 1.442695
        %v1124 = vpow.pop %v1123
        %v1125 = vmul.f32 %v1024, 1.442695
        %v1126 = vpow.pop %v1125
        %v1127 = vmul.f32 %v1025, 1.442695
        %v1128 = vpow.pop %v1127
        %v1129 = vmul.f32 %v1026, 1.442695
        %v1130 = vpow.pop %v1129
        %v1131 = vmul.f32 %v1027, 1.442695
        %v1132 = vpow.pop %v1131
        %v1133 = vmul.f32 %v1028, 1.442695
        %v1134 = vpow.pop %v1133
        %v1135 = vmul.f32 %v1029, 1.442695
        %v1136 = vpow.pop %v1135
        %v1137 = vmul.f32 %v1030, 1.442695
        %v1138 = vpow.pop %v1137
        %v1139 = vmul.f32 %v1031, 1.442695
        %v1140 = vpow.pop %v1139
        %v1141 = vmul.f32 %v1032, 1.442695
        %v1142 = vpow.pop %v1141
        %v1143 = vmul.f32 %v1033, 1.442695
        %v1144 = vpow.pop %v1143
        %v1145 = vmul.f32 %v1034, 1.442695
        %v1146 = vpow.pop %v1145
        %v1147 = vmul.f32 %v1035, 1.442695
        %v1148 = vpow.pop %v1147
        %v1149 = vmul.f32 %v1036, 1.442695
        %v1150 = vpow.pop %v1149
        %v1151 = vmul.f32 %v1037, 1.442695
        %v1152 = vpow.pop %v1151
        %v1153 = vmul.f32 %v1038, 1.442695
        %v1154 = vpow.pop %v1153
        %v1155 = vmul.f32 %v1039, 1.442695
        %v1156 = vpow.pop %v1155
        %v1157 = vmul.f32 %v1040, 1.442695
        %v1158 = vpow.pop %v1157
        %v1159 = vmul.f32 %v1041, 1.442695
        %v1160 = vpow.pop %v1159
        %v1161 = vmul.f32 %v1042, 1.442695
        %v1162 = vpow.pop %v1161
        %v1163 = vmul.f32 %v1043, 1.442695
        %v1164 = vpow.pop %v1163
        %v1165 = vmul.f32 %v1044, 1.442695
        %v1166 = vpow.pop %v1165
        %v1167 = vmul.f32 %v1045, 1.442695
        %v1168 = vpow.pop %v1167
        %v1169 = vmul.f32 %v1046, 1.442695
        %v1170 = vpow.pop %v1169
        %v1171 = vmul.f32 %v1047, 1.442695
        %v1172 = vpow.pop %v1171
        %v1173 = vmul.f32 %v1048, 1.442695
        %v1174 = vpow.pop %v1173
        %v1175 = vmul.f32 %v1049, 1.442695
        %v1176 = vpow.pop %v1175
        %v1177 = vmul.f32 %v1050, 1.442695
        %v1178 = vpow.pop %v1177
        %v1179 = vadd.f32 %v1052, %v1054
        %1180 = vadd.xlane.f32.xlu0 %v1179
        %v1181 = vpop.xlane.xlu0 %1180
        %v1182 = vadd.f32 %v1056, %v1058
        %1183 = vadd.xlane.f32.xlu0 %v1182
        %v1184 = vpop.xlane.xlu0 %1183
        %v1185 = vadd.f32 %v1060, %v1062
        %1186 = vadd.xlane.f32.xlu0 %v1185
        %v1187 = vpop.xlane.xlu0 %1186
        %v1188 = vadd.f32 %v1064, %v1066
        %1189 = vadd.xlane.f32.xlu0 %v1188
        %v1190 = vpop.xlane.xlu0 %1189
        %v1191 = vadd.f32 %v1068, %v1070
        %1192 = vadd.xlane.f32.xlu0 %v1191
        %v1193 = vpop.xlane.xlu0 %1192
        %v1194 = vadd.f32 %v1072, %v1074
        %1195 = vadd.xlane.f32.xlu0 %v1194
        %v1196 = vpop.xlane.xlu0 %1195
        %v1197 = vadd.f32 %v1076, %v1078
        %1198 = vadd.xlane.f32.xlu0 %v1197
        %v1199 = vpop.xlane.xlu0 %1198
        %v1200 = vadd.f32 %v1080, %v1082
        %1201 = vadd.xlane.f32.xlu0 %v1200
        %v1202 = vpop.xlane.xlu0 %1201
        %v1203 = vadd.f32 %v1084, %v1086
        %1204 = vadd.xlane.f32.xlu0 %v1203
        %v1205 = vpop.xlane.xlu0 %1204
        %v1206 = vadd.f32 %v1088, %v1090
        %1207 = vadd.xlane.f32.xlu0 %v1206
        %v1208 = vpop.xlane.xlu0 %1207
        %v1209 = vadd.f32 %v1092, %v1094
        %1210 = vadd.xlane.f32.xlu0 %v1209
        %v1211 = vpop.xlane.xlu0 %1210
        %v1212 = vadd.f32 %v1096, %v1098
        %1213 = vadd.xlane.f32.xlu0 %v1212
        %v1214 = vpop.xlane.xlu0 %1213
        %v1215 = vadd.f32 %v1100, %v1102
        %1216 = vadd.xlane.f32.xlu0 %v1215
        %v1217 = vpop.xlane.xlu0 %1216
        %v1218 = vadd.f32 %v1104, %v1106
        %1219 = vadd.xlane.f32.xlu0 %v1218
        %v1220 = vpop.xlane.xlu0 %1219
        %v1221 = vadd.f32 %v1108, %v1110
        %1222 = vadd.xlane.f32.xlu0 %v1221
        %v1223 = vpop.xlane.xlu0 %1222
        %v1224 = vadd.f32 %v1112, %v1114
        %1225 = vadd.xlane.f32.xlu0 %v1224
        %v1226 = vpop.xlane.xlu0 %1225
        %v1227 = vadd.f32 %v1116, %v1118
        %1228 = vadd.xlane.f32.xlu0 %v1227
        %v1229 = vpop.xlane.xlu0 %1228
        %v1230 = vadd.f32 %v1120, %v1122
        %1231 = vadd.xlane.f32.xlu0 %v1230
        %v1232 = vpop.xlane.xlu0 %1231
        %v1233 = vadd.f32 %v1124, %v1126
        %1234 = vadd.xlane.f32.xlu0 %v1233
        %v1235 = vpop.xlane.xlu0 %1234
        %v1236 = vadd.f32 %v1128, %v1130
        %1237 = vadd.xlane.f32.xlu0 %v1236
        %v1238 = vpop.xlane.xlu0 %1237
        %v1239 = vadd.f32 %v1132, %v1134
        %1240 = vadd.xlane.f32.xlu0 %v1239
        %v1241 = vpop.xlane.xlu0 %1240
        %v1242 = vadd.f32 %v1136, %v1138
        %1243 = vadd.xlane.f32.xlu0 %v1242
        %v1244 = vpop.xlane.xlu0 %1243
        %v1245 = vadd.f32 %v1140, %v1142
        %1246 = vadd.xlane.f32.xlu0 %v1245
        %v1247 = vpop.xlane.xlu0 %1246
        %v1248 = vadd.f32 %v1144, %v1146
        %1249 = vadd.xlane.f32.xlu0 %v1248
        %v1250 = vpop.xlane.xlu0 %1249
        %v1251 = vadd.f32 %v1148, %v1150
        %1252 = vadd.xlane.f32.xlu0 %v1251
        %v1253 = vpop.xlane.xlu0 %1252
        %v1254 = vadd.f32 %v1152, %v1154
        %1255 = vadd.xlane.f32.xlu0 %v1254
        %v1256 = vpop.xlane.xlu0 %1255
        %v1257 = vadd.f32 %v1156, %v1158
        %1258 = vadd.xlane.f32.xlu0 %v1257
        %v1259 = vpop.xlane.xlu0 %1258
        %v1260 = vadd.f32 %v1160, %v1162
        %1261 = vadd.xlane.f32.xlu0 %v1260
        %v1262 = vpop.xlane.xlu0 %1261
        %v1263 = vadd.f32 %v1164, %v1166
        %1264 = vadd.xlane.f32.xlu0 %v1263
        %v1265 = vpop.xlane.xlu0 %1264
        %v1266 = vadd.f32 %v1168, %v1170
        %1267 = vadd.xlane.f32.xlu0 %v1266
        %v1268 = vpop.xlane.xlu0 %1267
        %v1269 = vadd.f32 %v1172, %v1174
        %1270 = vadd.xlane.f32.xlu0 %v1269
        %v1271 = vpop.xlane.xlu0 %1270
        %v1272 = vadd.f32 %v1176, %v1178
        %1273 = vadd.xlane.f32.xlu0 %v1272
        %v1274 = vpop.xlane.xlu0 %1273
        %v1275 = vmul.f32 %v765, %v955
        %v1276 = vmul.f32 %v768, %v956
        %v1277 = vmul.f32 %v771, %v957
        %v1278 = vmul.f32 %v774, %v958
        %v1279 = vmul.f32 %v777, %v959
        %v1280 = vmul.f32 %v780, %v960
        %v1281 = vmul.f32 %v783, %v961
        %v1282 = vmul.f32 %v786, %v962
        %v1283 = vmul.f32 %v789, %v963
        %v1284 = vmul.f32 %v792, %v964
        %v1285 = vmul.f32 %v795, %v965
        %v1286 = vmul.f32 %v798, %v966
        %v1287 = vmul.f32 %v801, %v967
        %v1288 = vmul.f32 %v804, %v968
        %v1289 = vmul.f32 %v807, %v969
        %v1290 = vmul.f32 %v810, %v970
        %v1291 = vmul.f32 %v813, %v971
        %v1292 = vmul.f32 %v816, %v972
        %v1293 = vmul.f32 %v819, %v973
        %v1294 = vmul.f32 %v822, %v974
        %v1295 = vmul.f32 %v825, %v975
        %v1296 = vmul.f32 %v828, %v976
        %v1297 = vmul.f32 %v831, %v977
        %v1298 = vmul.f32 %v834, %v978
        %v1299 = vmul.f32 %v837, %v979
        %v1300 = vmul.f32 %v840, %v980
        %v1301 = vmul.f32 %v843, %v981
        %v1302 = vmul.f32 %v846, %v982
        %v1303 = vmul.f32 %v849, %v983
        %v1304 = vmul.f32 %v852, %v984
        %v1305 = vmul.f32 %v855, %v985
        %v1306 = vmul.f32 %v858, %v986
        %v1307 = vmul.f32 %v1275, 1.442695
        %v1308 = vpow.pop %v1307
        %v1309 = vmul.f32 %v1276, 1.442695
        %v1310 = vpow.pop %v1309
        %v1311 = vmul.f32 %v1277, 1.442695
        %v1312 = vpow.pop %v1311
        %v1313 = vmul.f32 %v1278, 1.442695
        %v1314 = vpow.pop %v1313
        %v1315 = vmul.f32 %v1279, 1.442695
        %v1316 = vpow.pop %v1315
        %v1317 = vmul.f32 %v1280, 1.442695
        %v1318 = vpow.pop %v1317
        %v1319 = vmul.f32 %v1281, 1.442695
        %v1320 = vpow.pop %v1319
        %v1321 = vmul.f32 %v1282, 1.442695
        %v1322 = vpow.pop %v1321
        %v1323 = vmul.f32 %v1283, 1.442695
        %v1324 = vpow.pop %v1323
        %v1325 = vmul.f32 %v1284, 1.442695
        %v1326 = vpow.pop %v1325
        %v1327 = vmul.f32 %v1285, 1.442695
        %v1328 = vpow.pop %v1327
        %v1329 = vmul.f32 %v1286, 1.442695
        %v1330 = vpow.pop %v1329
        %v1331 = vmul.f32 %v1287, 1.442695
        %v1332 = vpow.pop %v1331
        %v1333 = vmul.f32 %v1288, 1.442695
        %v1334 = vpow.pop %v1333
        %v1335 = vmul.f32 %v1289, 1.442695
        %v1336 = vpow.pop %v1335
        %v1337 = vmul.f32 %v1290, 1.442695
        %v1338 = vpow.pop %v1337
        %v1339 = vmul.f32 %v1291, 1.442695
        %v1340 = vpow.pop %v1339
        %v1341 = vmul.f32 %v1292, 1.442695
        %v1342 = vpow.pop %v1341
        %v1343 = vmul.f32 %v1293, 1.442695
        %v1344 = vpow.pop %v1343
        %v1345 = vmul.f32 %v1294, 1.442695
        %v1346 = vpow.pop %v1345
        %v1347 = vmul.f32 %v1295, 1.442695
        %v1348 = vpow.pop %v1347
        %v1349 = vmul.f32 %v1296, 1.442695
        %v1350 = vpow.pop %v1349
        %v1351 = vmul.f32 %v1297, 1.442695
        %v1352 = vpow.pop %v1351
        %v1353 = vmul.f32 %v1298, 1.442695
        %v1354 = vpow.pop %v1353
        %v1355 = vmul.f32 %v1299, 1.442695
        %v1356 = vpow.pop %v1355
        %v1357 = vmul.f32 %v1300, 1.442695
        %v1358 = vpow.pop %v1357
        %v1359 = vmul.f32 %v1301, 1.442695
        %v1360 = vpow.pop %v1359
        %v1361 = vmul.f32 %v1302, 1.442695
        %v1362 = vpow.pop %v1361
        %v1363 = vmul.f32 %v1303, 1.442695
        %v1364 = vpow.pop %v1363
        %v1365 = vmul.f32 %v1304, 1.442695
        %v1366 = vpow.pop %v1365
        %v1367 = vmul.f32 %v1305, 1.442695
        %v1368 = vpow.pop %v1367
        %v1369 = vmul.f32 %v1306, 1.442695
        %v1370 = vpow.pop %v1369
        %v1371 = vrcp.pop %v1181
        %v1372 = vrcp.pop %v1184
        %v1373 = vrcp.pop %v1187
        %v1374 = vrcp.pop %v1190
        %v1375 = vrcp.pop %v1193
        %v1376 = vrcp.pop %v1196
        %v1377 = vrcp.pop %v1199
        %v1378 = vrcp.pop %v1202
        %v1379 = vrcp.pop %v1205
        %v1380 = vrcp.pop %v1208
        %v1381 = vrcp.pop %v1211
        %v1382 = vrcp.pop %v1214
        %v1383 = vrcp.pop %v1217
        %v1384 = vrcp.pop %v1220
        %v1385 = vrcp.pop %v1223
        %v1386 = vrcp.pop %v1226
        %v1387 = vrcp.pop %v1229
        %v1388 = vrcp.pop %v1232
        %v1389 = vrcp.pop %v1235
        %v1390 = vrcp.pop %v1238
        %v1391 = vrcp.pop %v1241
        %v1392 = vrcp.pop %v1244
        %v1393 = vrcp.pop %v1247
        %v1394 = vrcp.pop %v1250
        %v1395 = vrcp.pop %v1253
        %v1396 = vrcp.pop %v1256
        %v1397 = vrcp.pop %v1259
        %v1398 = vrcp.pop %v1262
        %v1399 = vrcp.pop %v1265
        %v1400 = vrcp.pop %v1268
        %v1401 = vrcp.pop %v1271
        %v1402 = vrcp.pop %v1274
        %v1403 = vmul.f32 %v1308, %v1371
        %v1404 = vmul.f32 %v1310, %v1372
        %v1405 = vmul.f32 %v1312, %v1373
        %v1406 = vmul.f32 %v1314, %v1374
        %v1407 = vmul.f32 %v1316, %v1375
        %v1408 = vmul.f32 %v1318, %v1376
        %v1409 = vmul.f32 %v1320, %v1377
        %v1410 = vmul.f32 %v1322, %v1378
        %v1411 = vmul.f32 %v1324, %v1379
        %v1412 = vmul.f32 %v1326, %v1380
        %v1413 = vmul.f32 %v1328, %v1381
        %v1414 = vmul.f32 %v1330, %v1382
        %v1415 = vmul.f32 %v1332, %v1383
        %v1416 = vmul.f32 %v1334, %v1384
        %v1417 = vmul.f32 %v1336, %v1385
        %v1418 = vmul.f32 %v1338, %v1386
        %v1419 = vmul.f32 %v1340, %v1387
        %v1420 = vmul.f32 %v1342, %v1388
        %v1421 = vmul.f32 %v1344, %v1389
        %v1422 = vmul.f32 %v1346, %v1390
        %v1423 = vmul.f32 %v1348, %v1391
        %v1424 = vmul.f32 %v1350, %v1392
        %v1425 = vmul.f32 %v1352, %v1393
        %v1426 = vmul.f32 %v1354, %v1394
        %v1427 = vmul.f32 %v1356, %v1395
        %v1428 = vmul.f32 %v1358, %v1396
        %v1429 = vmul.f32 %v1360, %v1397
        %v1430 = vmul.f32 %v1362, %v1398
        %v1431 = vmul.f32 %v1364, %v1399
        %v1432 = vmul.f32 %v1366, %v1400
        %v1433 = vmul.f32 %v1368, %v1401
        %v1434 = vmul.f32 %v1370, %v1402
        %vm1435 = vcmask 7168
        %v1436 = vsel %vm1435, %v1403, 0.0
        %v1437 = vsel %vm1435, %v1404, 0.0
        %v1438 = vadd.f32 %v1436, %v1437
        %v1439 = vsel %vm1435, %v1405, 0.0
        %v1440 = vadd.f32 %v1438, %v1439
        %v1441 = vsel %vm1435, %v1406, 0.0
        %v1442 = vadd.f32 %v1440, %v1441
        %v1443 = vsel %vm1435, %v1407, 0.0
        %v1444 = vadd.f32 %v1442, %v1443
        %v1445 = vsel %vm1435, %v1408, 0.0
        %v1446 = vadd.f32 %v1444, %v1445
        %v1447 = vsel %vm1435, %v1409, 0.0
        %v1448 = vadd.f32 %v1446, %v1447
        %v1449 = vsel %vm1435, %v1410, 0.0
        %v1450 = vadd.f32 %v1448, %v1449
        %v1451 = vsel %vm1435, %v1411, 0.0
        %v1452 = vadd.f32 %v1450, %v1451
        %v1453 = vsel %vm1435, %v1412, 0.0
        %v1454 = vadd.f32 %v1452, %v1453
        %v1455 = vsel %vm1435, %v1413, 0.0
        %v1456 = vadd.f32 %v1454, %v1455
        %v1457 = vsel %vm1435, %v1414, 0.0
        %v1458 = vadd.f32 %v1456, %v1457
        %v1459 = vsel %vm1435, %v1415, 0.0
        %v1460 = vadd.f32 %v1458, %v1459
        %v1461 = vsel %vm1435, %v1416, 0.0
        %v1462 = vadd.f32 %v1460, %v1461
        %v1463 = vsel %vm1435, %v1417, 0.0
        %v1464 = vadd.f32 %v1462, %v1463
        %v1465 = vsel %vm1435, %v1418, 0.0
        %v1466 = vadd.f32 %v1464, %v1465
        %v1467 = vsel %vm1435, %v1419, 0.0
        %v1468 = vadd.f32 %v1466, %v1467
        %v1469 = vsel %vm1435, %v1420, 0.0
        %v1470 = vadd.f32 %v1468, %v1469
        %v1471 = vsel %vm1435, %v1421, 0.0
        %v1472 = vadd.f32 %v1470, %v1471
        %v1473 = vsel %vm1435, %v1422, 0.0
        %v1474 = vadd.f32 %v1472, %v1473
        %v1475 = vsel %vm1435, %v1423, 0.0
        %v1476 = vadd.f32 %v1474, %v1475
        %v1477 = vsel %vm1435, %v1424, 0.0
        %v1478 = vadd.f32 %v1476, %v1477
        %v1479 = vsel %vm1435, %v1425, 0.0
        %v1480 = vadd.f32 %v1478, %v1479
        %v1481 = vsel %vm1435, %v1426, 0.0
        %v1482 = vadd.f32 %v1480, %v1481
        %v1483 = vsel %vm1435, %v1427, 0.0
        %v1484 = vadd.f32 %v1482, %v1483
        %v1485 = vsel %vm1435, %v1428, 0.0
        %v1486 = vadd.f32 %v1484, %v1485
        %v1487 = vsel %vm1435, %v1429, 0.0
        %v1488 = vadd.f32 %v1486, %v1487
        %v1489 = vsel %vm1435, %v1430, 0.0
        %v1490 = vadd.f32 %v1488, %v1489
        %v1491 = vsel %vm1435, %v1431, 0.0
        %v1492 = vadd.f32 %v1490, %v1491
        %v1493 = vsel %vm1435, %v1432, 0.0
        %v1494 = vadd.f32 %v1492, %v1493
        %v1495 = vsel %vm1435, %v1433, 0.0
        %v1496 = vadd.f32 %v1494, %v1495
        %v1497 = vsel %vm1435, %v1434, 0.0
        %v1498 = vadd.f32 %v1496, %v1497
        %1499 = vadd.xlane.f32.xlu0 %v1498
        %v1500 = vpop.xlane.xlu0 %1499
        %v1501 = vrot.slane %v1500, 4
        %v1502 = vadd.f32 %v1500, %v1501
        %v1503 = vrot.slane %v1502, 2
        %v1504 = vadd.f32 %v1502, %v1503
        %v1505 = vrot.slane %v1504, 1
        %v1506 = vadd.f32 %v1504, %v1505
        %s1507 = vtos %v1506
        %v1508 = vrcp.pop 256.0
        %s1509 = vtos %v1508
        %s1510 = smul.f32 %s1507, %s1509
        %v1511 = vstv %s1510
        %1512 = vst [vmem:[%s197] sm:$0xff] %v1511
        %s1513 = sand.u32 %s82, 1
        %s1514 = scalar_lea.sflag [#allocation4], %s1513
        %s1515 = sand.u32 %s82, 1
        %s1516 = smul.addr %s1515, 8
        %s1517 = scalar_lea.vmem [#allocation7], %s1516
        // Predicated region
        $region37: #{tpu_custom_call.1} parent=27 // pred_check
          %p1518 = pneg %p92
        $region38: #{tpu_custom_call.1} parent=27 // pred_check_branch
          %1520 = sbr.rel (%p1518) target = $region40
        $region39: #{tpu_custom_call.1} parent=27 // pred_region
          %s1522 = ssub.s32 128, 128
          %1523 = vsyncadd %s1514, %s1522
          %s1524 = smul.addr %s22, 128
          %s1525 = scalar_lea.hbm %s2, %s1524
          %s1527 = sshll.u32 %s1517, 4
          %s1528 = int_to_ptr.vmem [resolvable:$true] %s1527
          %1530 = dma.vmem_to_hbm [thread:$0]  %s1528, 128, %s1525, %s1514
        $region40: #{tpu_custom_call.1} parent=27 // pred_fallthru
          _
      $region28: #{tpu_custom_call.1} parent=5 // pred_fallthru
        _
      %p1531 = scmp.le.s32.totalorder 2, %s17
      // Predicated region
      $region41: #{tpu_custom_call.1} parent=5 // pred_check
        %p1532 = pneg %p1531
      $region42: #{tpu_custom_call.1} parent=5 // pred_check_branch
        %1534 = sbr.rel (%p1532) target = $region44
      $region43: #{tpu_custom_call.1} parent=5 // pred_region
        %s1535 = ssub.s32 %s17, 2
        // Predicated region
        $region45: #{tpu_custom_call.1} parent=43 // pred_check
          %p1536 = pneg %p98
        $region46: #{tpu_custom_call.1} parent=43 // pred_check_branch
          %1538 = sbr.rel (%p1536) target = $region48
        $region47: #{tpu_custom_call.1} parent=43 // pred_region
          %s1539 = sand.u32 %s83, 1
          %s1540 = scalar_lea.sflag [#allocation4], %s1539
          %s1541 = sand.u32 %s83, 1
          %s1542 = smul.addr %s1541, 8
          %s1543 = scalar_lea.vmem [#allocation7], %s1542
          %1544 = dma.done %s1540, 128
        $region48: #{tpu_custom_call.1} parent=43 // pred_fallthru
          _
      $region44: #{tpu_custom_call.1} parent=5 // pred_fallthru
        _
    $region6: #{tpu_custom_call.1} parent=1 // loop_footer
      %s21 = sadd.s32 1, %s17
    $region7: #{tpu_custom_call.1} parent=1 // loop_footer_branch
      %16 = sbr.rel target = $region3
    $region8: #{tpu_custom_call.1} parent=1 // loop_exit
      _
    %1545 = vsyncpa [#allocation3], 1
    %s1546 = scalar_lea.sflag [#allocation3], 1
    %1547 = vsyncpa %s1546, 1
    %1548 = vsyncpa [#allocation6], 1
    %s1549 = scalar_lea.sflag [#allocation6], 1
    %1550 = vsyncpa %s1549, 1
    %1551 = vsyncpa [#allocation4], 1
    %s1552 = scalar_lea.sflag [#allocation4], 1
    %1553 = vsyncpa %s1552, 1

</llo_original>
